<compile_context>
chip_gen: v6e
topology: v6e:2x2x1
jax: 0.10.0
libtpu: 0.0.40
codegen_flags: <defaults>
</compile_context>

<pallas_src>
import math
from functools import partial

import jax
import jax.numpy as jnp
from jax.experimental import pallas as pl
from jax.experimental.pallas import tpu as pltpu


# ---------------- kernel --------------------------------------------------------
def _drop_path_kernel(u_ref, x_ref, o_ref, *, keep_prob):
    # u_ref: (B,) f32 uniform draws in SMEM (one per sample).
    # x_ref/o_ref: (1, TR, L) activation tile (sample, row-block, lanes).
    b = pl.program_id(0)
    u = u_ref[b]                                     # f32 scalar load from SMEM
    # floor(keep_prob + u) with keep_prob + u in [keep_prob, keep_prob + 1)
    # equals 1 iff keep_prob + u >= 1.0; fold the 1/keep_prob rescale in.
    scale = jnp.where(keep_prob + u >= 1.0, 1.0 / keep_prob, 0.0)   # f32 scalar
    o_ref[...] = (x_ref[...].astype(jnp.float32) * scale).astype(o_ref.dtype)


# ---------------- layout helpers ------------------------------------------------
def _choose_lanes(F: int) -> int:
    """Pick the lane width for the per-sample feature slab.

    Prefer the largest L <= 2048 that is a multiple of 128, divides F, and
    leaves at least 8 rows (sublane-dense blocks). Fall back to the largest
    128-multiple divisor, then to F itself (full-dim exemption)."""
    best = 0
    L = min(2048, (F // 128) * 128)
    while L >= 128:
        if F % L == 0:
            if best == 0:
                best = L
            if F // L >= 8:
                return L
        L -= 128
    return best if best else F


@partial(jax.jit, static_argnames=("keep_prob",))
def _drop_path_pallas(x3, u, *, keep_prob):
    B, rows, L = x3.shape
    itemsize = x3.dtype.itemsize
    # Row tile: ~1 MiB per buffer (2 bufs each for in/out -> ~4 MiB/step, well
    # inside the default scoped VMEM on v5e/v6e/v7x), multiple of 8 sublanes.
    tr = max(8, ((1 << 20) // max(1, L * itemsize)) // 8 * 8)
    TR = rows if rows <= tr else tr
    grid = (B, pl.cdiv(rows, TR))

    return pl.pallas_call(
        partial(_drop_path_kernel, keep_prob=keep_prob),
        out_shape=jax.ShapeDtypeStruct((B, rows, L), x3.dtype),
        grid=grid,
        in_specs=[
            # Per-sample uniform draws: tiny, keep whole array resident in SMEM.
            pl.BlockSpec(memory_space=pltpu.MemorySpace.SMEM),
            # Activations: one sample per block along B, TR rows, full lane axis.
            pl.BlockSpec((1, TR, L), lambda b, r: (b, r, 0)),
        ],
        out_specs=pl.BlockSpec((1, TR, L), lambda b, r: (b, r, 0)),
        input_output_aliases={1: 0},          # x3 can be updated in place
        compiler_params=pltpu.CompilerParams(
            dimension_semantics=("parallel", "parallel")),
    )(u, x3)


# ---------------- wrapper (module-equivalent forward) ---------------------------
def drop_path(x, drop_prob: float = 0.0, *, training: bool = False, key=None):
    """Per-sample stochastic depth; forward-equivalent to the PyTorch module."""
    if drop_prob == 0.0 or not training:
        return x                                 # identity, same as torch
    if key is None:
        raise ValueError("training-mode DropPath requires a PRNG key")
    keep_prob = 1.0 - float(drop_prob)

    B = x.shape[0]
    F = int(math.prod(x.shape[1:])) if x.ndim > 1 else 1
    L = _choose_lanes(F)
    rows = F // L
    x3 = x.reshape(B, rows, L)

    # One uniform draw per sample (torch: torch.rand((B, 1, ..., 1))).
    # Drawn in f32 regardless of x.dtype so keep/rescale math is full precision.
    u = jax.random.uniform(key, (B,), dtype=jnp.float32)

    out = _drop_path_pallas(x3, u, keep_prob=keep_prob)
    return out.reshape(x.shape)


class DropPath:
    """Thin module-style wrapper mirroring the nn.Module interface."""

    def __init__(self, drop_prob=None):
        self.drop_prob = 0.0 if drop_prob is None else float(drop_prob)
        self.training = True

    def __call__(self, x, *, key=None):
        return drop_path(x, self.drop_prob, training=self.training, key=key)


# ---------------- self-test ------------------------------------------------------
if __name__ == "__main__":
    root = jax.random.PRNGKey(0)
    k_x, k_drop = jax.random.split(root)

    x = jax.random.normal(k_x, (2, 4, 16, 16), dtype=jnp.float32)

    # --- eval / p==0 path: identity, exactly like the reference module ----------
    y_eval = drop_path(x, drop_prob=0.25, training=False)
    assert y_eval.shape == x.shape
    assert jnp.array_equal(y_eval, x)

    # --- training path (f32): per-sample drop + 1/keep_prob rescale -------------
    drop_prob = 0.25
    keep_prob = 1.0 - drop_prob
    y = drop_path(x, drop_prob=drop_prob, training=True, key=k_drop)
    y = jax.block_until_ready(y)

    # pure-JAX reference using the identical uniform draws / identical math
    u = jax.random.uniform(k_drop, (x.shape[0],), dtype=jnp.float32)
    scale = jnp.floor(keep_prob + u) * (1.0 / keep_prob)     # 0 or 1/keep_prob
    y_ref = x * scale.reshape(x.shape[0], 1, 1, 1)

    assert y.shape == x.shape and y.dtype == x.dtype
    assert jnp.allclose(y, y_ref, rtol=1e-6, atol=1e-6), "f32 mismatch vs reference"

    # --- training path (bf16): scale math stays in f32 inside the kernel --------
    x_bf = x.astype(jnp.bfloat16)
    y_bf = drop_path(x_bf, drop_prob=drop_prob, training=True, key=k_drop)
    y_bf = jax.block_until_ready(y_bf)
    y_bf_ref = (x_bf.astype(jnp.float32)
                * scale.reshape(x.shape[0], 1, 1, 1)).astype(jnp.bfloat16)
    assert y_bf.dtype == jnp.bfloat16 and y_bf.shape == x.shape
    assert jnp.allclose(y_bf.astype(jnp.float32), y_bf_ref.astype(jnp.float32),
                        rtol=1e-2, atol=1e-2), "bf16 mismatch vs reference"

    print("KERNEL_OK")
</pallas_src>

<mosaic_0001>
module attributes {stable_mosaic.version = 11 : i64} {
  func.func @_drop_path_kernel(%arg0: i32, %arg1: i32, %arg2: memref<2xf32, #tpu.memory_space<smem>>, %arg3: memref<1x8x128xf32, #tpu.memory_space<vmem>>, %arg4: memref<1x8x128xf32, #tpu.memory_space<vmem>>) attributes {dimension_semantics = [#tpu.dimension_semantics<parallel>, #tpu.dimension_semantics<parallel>], iteration_bounds = array<i64: 2, 1>, scalar_prefetch = 0 : i64, scratch_operands = 0 : i64, tpu.core_type = #tpu.core_type<tc>, window_params = [{transform_indices = @transform_0, window_bounds = array<i64: 2>}, {transform_indices = @transform_1, window_bounds = array<i64: 1, 8, 128>}, {transform_indices = @transform_2, window_bounds = array<i64: 1, 8, 128>}]} {
    %0 = arith.index_cast %arg0 : i32 to index
    %1 = memref.load %arg2[%0] : memref<2xf32, #tpu.memory_space<smem>>
    %cst = arith.constant 7.500000e-01 : f32
    %2 = arith.addf %cst, %1 : f32
    %cst_0 = arith.constant 1.000000e+00 : f32
    %3 = arith.cmpf oge, %2, %cst_0 : f32
    %cst_1 = arith.constant 1.33333337 : f32
    %cst_2 = arith.constant 0.000000e+00 : f32
    %4 = arith.select %3, %cst_1, %cst_2 : f32
    %c0 = arith.constant 0 : index
    %c0_3 = arith.constant 0 : index
    %c0_4 = arith.constant 0 : index
    %5 = vector.load %arg3[%c0, %c0_3, %c0_4] : memref<1x8x128xf32, #tpu.memory_space<vmem>>, vector<1x8x128xf32>
    %6 = vector.broadcast %4 : f32 to vector<1x8x128xf32>
    %7 = arith.mulf %5, %6 : vector<1x8x128xf32>
    %c0_5 = arith.constant 0 : index
    %c0_6 = arith.constant 0 : index
    %c0_7 = arith.constant 0 : index
    %8 = vector.load %arg4[%c0_5, %c0_6, %c0_7] : memref<1x8x128xf32, #tpu.memory_space<vmem>>, vector<1x8x128xf32>
    tpu.vector_store %arg4[%c0_5, %c0_6, %c0_7], %7 {strides = array<i32>} : memref<1x8x128xf32, #tpu.memory_space<vmem>>, vector<1x8x128xf32>,
    return
  }
  func.func @transform_0(%arg0: i32, %arg1: i32) -> i32 {
    %c0_i32 = arith.constant 0 : i32
    %c0_i32_0 = arith.constant 0 : i32
    return %c0_i32 : i32
  }
  func.func @transform_1(%arg0: i32, %arg1: i32) -> (i32, i32, i32) {
    %c0_i32 = arith.constant 0 : i32
    %c0_i32_0 = arith.constant 0 : i32
    return %arg0, %arg1, %c0_i32 : i32, i32, i32
  }
  func.func @transform_2(%arg0: i32, %arg1: i32) -> (i32, i32, i32) {
    %c0_i32 = arith.constant 0 : i32
    %c0_i32_0 = arith.constant 0 : i32
    return %arg0, %arg1, %c0_i32 : i32, i32, i32
  }
}

</mosaic_0001>

<llo_original>
// kernel: _drop_path_pallas.1
$region0: #{_drop_path_pallas.1}
  #allocation0 [shape = 'u32[]', space=smem, size = 0x4, offset = 0x4, fixed_abs, tag = 'smem constant byte address 0x4 - core index']
  #allocation1 [shape = 'u32[144,128]{1,0:T(1,128)}', space=vmem, size = 0x12000, scoped, tag = 'internal scratch']
  %s0 = inlined_call_operand.vmem [shape: f32[2], index: 0, kind: input, shape index: {}]
  %s1 = inlined_call_operand.hbm [shape: f32[2,8,128], index: 1, kind: input, shape index: {}, may-alias: {1,2}]
  %s2 = inlined_call_operand.hbm [shape: f32[2,8,128], index: 2, kind: output, shape index: {}, may-alias: {1,2}]
  %s3 = sld [smem:[#allocation0]]
  $region49: #{_drop_path_pallas.1} parent=0
    _
  %s5 = ssub.s32 1, %s3
  %s6 = scalar_select 0, %s5, %s3
  $region1: #{_drop_path_pallas.1} parent=0
    #allocation2 [shape = 'u8[512]{0}', space=smem, size = 0x200, scoped, tag = 'input window, operand 0, single buffered']
    #allocation3 [shape = 's32[2]{0}', space=sflag, size = 0x8, scoped, tag = 'scoped memory for _drop_path_pallas.1']
    #allocation4 [shape = 's32[2]{0}', space=sflag, size = 0x8, scoped, tag = 'scoped memory for _drop_path_pallas.1']
    #allocation5 [shape = 's32[2]{0}', space=sflag, size = 0x8, scoped, tag = 'scoped memory for _drop_path_pallas.1']
    #allocation6 [shape = 'u8[8192]{0}', space=vmem, size = 0x2000, scoped, tag = 'input window, operand 1']
    #allocation7 [shape = 'u8[8192]{0}', space=vmem, size = 0x2000, scoped, tag = 'output window, operand 0']
    %7 = vsyncpa [#allocation5], 0
    %8 = vsyncpa [#allocation3], 0
    %s9 = scalar_lea.sflag [#allocation3], 1
    %10 = vsyncpa %s9, 0
    %11 = vsyncpa [#allocation4], 0
    %s12 = scalar_lea.sflag [#allocation4], 1
    %13 = vsyncpa %s12, 0
    loop: start=0, step=1, limit=4
    $region2: #{_drop_path_pallas.1} parent=1 // loop_pre_header
      _
    $region3: #{_drop_path_pallas.1} parent=1 // loop_header
      %s15 = sphi 0, %s19
      %p16 = scmp.ge.s32.totalorder %s15, 4
      %s22 = sphi 0, %s34
      %s23 = sphi 0, %s30
      %s24 = sphi 0, %s22
      %s25 = sphi 0, %s23
      %s26 = sphi 0, %s24
      %s27 = sphi 0, %s25
      %s35 = sphi 0, %s35
      %s37 = sphi 0, %s35
      %s38 = sphi 0, %s37
      %s52 = sphi 0, %s38
      %s60 = sphi 0, %s62
      %s63 = sphi 0, %s60
      %s64 = sphi 0, %s63
      %s80 = sphi 0, %s64
      %s88 = sphi 0, %s90
      %s91 = sphi 0, %s88
      %s92 = sphi 0, %s91
      %s108 = sphi 0, %s92
    $region4: #{_drop_path_pallas.1} parent=1 // loop_header_branch
      %18 = sbr.rel (%p16) target = $region8
    $region5: #{_drop_path_pallas.1} parent=1 // loop_body
      %s20 = ssub.s32 %s15, 1
      %s21 = ssub.s32 %s15, 2
      %s28 = sadd.s32 1, %s23
      %p29 = scmp.ge.s32.totalorder %s28, 1
      %s30 = scalar_select %p29, 0, %s28
      %s31 = sadd.s32 1, %s22
      %s32 = scalar_select %p29, %s31, %s22
      %p33 = scmp.ge.s32.totalorder %s32, 2
      %s34 = scalar_select %p33, 0, %s32
      %s36 = sadd.s32 %s35, 1
      %p39 = scmp.eq.s32.totalorder %s15, 1
      %p40 = scmp.ne.s32.totalorder %s35, %s37
      %p41 = scmp.eq.s32.totalorder %s15, 0
      %p42 = por %p40, %p41
      %p43 = scmp.ne.s32.totalorder %s35, %s37
      %p44 = scmp.eq.s32.totalorder %s20, 1
      %p45 = por %p43, %p44
      %p46 = scmp.ne.s32.totalorder %s37, %s38
      %p47 = scmp.eq.s32.totalorder %s20, 0
      %p48 = por %p46, %p47
      %p49 = scmp.ne.s32.totalorder %s37, %s38
      %p50 = scmp.eq.s32.totalorder %s21, 1
      %p51 = por %p49, %p50
      %p53 = scmp.ne.s32.totalorder %s38, %s52
      %p54 = scmp.eq.s32.totalorder %s21, 0
      %p55 = por %p53, %p54
      %s56 = ssub.s32 %s22, %s34
      %s57 = ssub.s32 %s23, %s30
      %s58 = sor.u32 %s56, %s57
      %p59 = scmp.eq.s32.totalorder %s58, 0
      %s61 = sadd.s32 %s60, 1
      %s62 = scalar_select %p59, %s60, %s61
      %p65 = pneg %p59
      %p66 = scmp.eq.s32.totalorder %s15, 1
      %p67 = por %p65, %p66
      %p68 = scmp.ne.s32.totalorder %s60, %s63
      %p69 = scmp.eq.s32.totalorder %s15, 0
      %p70 = por %p68, %p69
      %p71 = scmp.ne.s32.totalorder %s60, %s63
      %p72 = scmp.eq.s32.totalorder %s20, 1
      %p73 = por %p71, %p72
      %p74 = scmp.ne.s32.totalorder %s63, %s64
      %p75 = scmp.eq.s32.totalorder %s20, 0
      %p76 = por %p74, %p75
      %p77 = scmp.ne.s32.totalorder %s63, %s64
      %p78 = scmp.eq.s32.totalorder %s21, 1
      %p79 = por %p77, %p78
      %p81 = scmp.ne.s32.totalorder %s64, %s80
      %p82 = scmp.eq.s32.totalorder %s21, 0
      %p83 = por %p81, %p82
      %s84 = ssub.s32 %s22, %s34
      %s85 = ssub.s32 %s23, %s30
      %s86 = sor.u32 %s84, %s85
      %p87 = scmp.eq.s32.totalorder %s86, 0
      %s89 = sadd.s32 %s88, 1
      %s90 = scalar_select %p87, %s88, %s89
      %p93 = pneg %p87
      %p94 = scmp.eq.s32.totalorder %s15, 1
      %p95 = por %p93, %p94
      %p96 = scmp.ne.s32.totalorder %s88, %s91
      %p97 = scmp.eq.s32.totalorder %s15, 0
      %p98 = por %p96, %p97
      %p99 = scmp.ne.s32.totalorder %s88, %s91
      %p100 = scmp.eq.s32.totalorder %s20, 1
      %p101 = por %p99, %p100
      %p102 = scmp.ne.s32.totalorder %s91, %s92
      %p103 = scmp.eq.s32.totalorder %s20, 0
      %p104 = por %p102, %p103
      %p105 = scmp.ne.s32.totalorder %s91, %s92
      %p106 = scmp.eq.s32.totalorder %s21, 1
      %p107 = por %p105, %p106
      %p109 = scmp.ne.s32.totalorder %s92, %s108
      %p110 = scmp.eq.s32.totalorder %s21, 0
      %p111 = por %p109, %p110
      %p112 = scmp.le.s32.totalorder 1, %s15
      %p113 = scmp.lt.s32.totalorder %s15, 3
      %p114 = pnand %p112, %p113
      %p115 = pneg %p114
      // Predicated region
      $region9: #{_drop_path_pallas.1} parent=5 // pred_check
        _
      $region10: #{_drop_path_pallas.1} parent=5 // pred_check_branch
        %117 = sbr.rel (%p114) target = $region12
      $region11: #{_drop_path_pallas.1} parent=5 // pred_region
        %s118 = ssub.s32 %s15, 1
        // Predicated region
        $region13: #{_drop_path_pallas.1} parent=11 // pred_check
          %p119 = pneg %p48
        $region14: #{_drop_path_pallas.1} parent=11 // pred_check_branch
          %121 = sbr.rel (%p119) target = $region16
        $region15: #{_drop_path_pallas.1} parent=11 // pred_region
          %s123 = ssub.s32 16, 16
          %124 = vsyncadd [#allocation5], %s123
          %s126 = sshll.u32 %s0, 4
          %s127 = int_to_ptr.vmem [resolvable:$true] %s126
          %129 = dma.vmem_to_smem %s127, 16, [#allocation2], [#allocation5]
        $region16: #{_drop_path_pallas.1} parent=11 // pred_fallthru
          _
      $region12: #{_drop_path_pallas.1} parent=5 // pred_fallthru
        _
      %p130 = scmp.lt.s32.totalorder %s15, 2
      // Predicated region
      $region17: #{_drop_path_pallas.1} parent=5 // pred_check
        %p131 = pneg %p130
      $region18: #{_drop_path_pallas.1} parent=5 // pred_check_branch
        %133 = sbr.rel (%p131) target = $region20
      $region19: #{_drop_path_pallas.1} parent=5 // pred_region
        // Predicated region
        $region21: #{_drop_path_pallas.1} parent=19 // pred_check
          %p134 = pneg %p70
        $region22: #{_drop_path_pallas.1} parent=19 // pred_check_branch
          %136 = sbr.rel (%p134) target = $region24
        $region23: #{_drop_path_pallas.1} parent=19 // pred_region
          %s137 = sand.u32 %s60, 1
          %s138 = scalar_lea.sflag [#allocation3], %s137
          %s139 = sand.u32 %s60, 1
          %s140 = smul.addr %s139, 8
          %s141 = scalar_lea.vmem [#allocation6], %s140
          %s143 = ssub.s32 128, 128
          %144 = vsyncadd %s138, %s143
          %s145 = sadd.s32 %s23, %s22
          %s146 = smul.addr %s145, 128
          %s147 = scalar_lea.hbm %s1, %s146
          %s149 = sshll.u32 %s141, 4
          %s150 = int_to_ptr.vmem [resolvable:$true] %s149
          %152 = dma.hbm_to_vmem [thread:$0]  %s147, 128, %s150, %s138
        $region24: #{_drop_path_pallas.1} parent=19 // pred_fallthru
          _
      $region20: #{_drop_path_pallas.1} parent=5 // pred_fallthru
        _
      %p153 = scmp.le.s32.totalorder 1, %s15
      %p154 = scmp.lt.s32.totalorder %s15, 3
      %p155 = pnand %p153, %p154
      %p156 = pneg %p155
      // Predicated region
      $region25: #{_drop_path_pallas.1} parent=5 // pred_check
        _
      $region26: #{_drop_path_pallas.1} parent=5 // pred_check_branch
        %158 = sbr.rel (%p155) target = $region28
      $region27: #{_drop_path_pallas.1} parent=5 // pred_region
        %s159 = ssub.s32 %s15, 1
        // Predicated region
        $region29: #{_drop_path_pallas.1} parent=27 // pred_check
          %p160 = pneg %p48
        $region30: #{_drop_path_pallas.1} parent=27 // pred_check_branch
          %162 = sbr.rel (%p160) target = $region32
        $region31: #{_drop_path_pallas.1} parent=27 // pred_region
          %163 = dma.done [#allocation5], 16
        $region32: #{_drop_path_pallas.1} parent=27 // pred_fallthru
          _
        %s164 = sand.u32 %s63, 1
        %s165 = scalar_lea.sflag [#allocation3], %s164
        %s166 = sand.u32 %s63, 1
        %s167 = smul.addr %s166, 8
        %s168 = scalar_lea.vmem [#allocation6], %s167
        // Predicated region
        $region33: #{_drop_path_pallas.1} parent=27 // pred_check
          %p169 = pneg %p76
        $region34: #{_drop_path_pallas.1} parent=27 // pred_check_branch
          %171 = sbr.rel (%p169) target = $region36
        $region35: #{_drop_path_pallas.1} parent=27 // pred_region
          %172 = dma.done %s165, 128
        $region36: #{_drop_path_pallas.1} parent=27 // pred_fallthru
          _
        %173 = sfence
        %p174 = pneg %p48
        %p175 = pneg %p45
        %s176 = sand.u32 %s63, 1
        %s177 = scalar_lea.sflag [#allocation3], %s176
        %s178 = sand.u32 %s63, 1
        %s179 = smul.addr %s178, 8
        %s180 = scalar_lea.vmem [#allocation6], %s179
        %p181 = pneg %p76
        %p182 = pneg %p73
        %p183 = pneg %p104
        %p184 = pneg %p101
        %s185 = sand.u32 %s91, 1
        %s186 = scalar_lea.sflag [#allocation4], %s185
        %s187 = sand.u32 %s91, 1
        %s188 = smul.addr %s187, 8
        %s189 = scalar_lea.vmem [#allocation7], %s188
        %s190 = sld [smem:[#allocation2 + %s24]]
        %s191 = sadd.f32 %s190, 0.75
        %p192 = scmp.ge.f32.partialorder %s191, 1.0
        %s193 = scalar_select %p192, 1.3333334, 0.0
        %v194 = vld [vmem:[%s168] sm:$0xff]
        %v195 = vstv %s193
        %v196 = vmul.f32 %v194, %v195
        %197 = vst [vmem:[%s189] sm:$0xff] %v196
        %s198 = sand.u32 %s91, 1
        %s199 = scalar_lea.sflag [#allocation4], %s198
        %s200 = sand.u32 %s91, 1
        %s201 = smul.addr %s200, 8
        %s202 = scalar_lea.vmem [#allocation7], %s201
        // Predicated region
        $region37: #{_drop_path_pallas.1} parent=27 // pred_check
          %p203 = pneg %p101
        $region38: #{_drop_path_pallas.1} parent=27 // pred_check_branch
          %205 = sbr.rel (%p203) target = $region40
        $region39: #{_drop_path_pallas.1} parent=27 // pred_region
          %s207 = ssub.s32 128, 128
          %208 = vsyncadd %s199, %s207
          %s209 = sadd.s32 %s25, %s24
          %s210 = smul.addr %s209, 128
          %s211 = scalar_lea.hbm %s2, %s210
          %s213 = sshll.u32 %s202, 4
          %s214 = int_to_ptr.vmem [resolvable:$true] %s213
          %216 = dma.vmem_to_hbm [thread:$0]  %s214, 128, %s211, %s199
        $region40: #{_drop_path_pallas.1} parent=27 // pred_fallthru
          _
      $region28: #{_drop_path_pallas.1} parent=5 // pred_fallthru
        _
      %p217 = scmp.le.s32.totalorder 2, %s15
      // Predicated region
      $region41: #{_drop_path_pallas.1} parent=5 // pred_check
        %p218 = pneg %p217
      $region42: #{_drop_path_pallas.1} parent=5 // pred_check_branch
        %220 = sbr.rel (%p218) target = $region44
      $region43: #{_drop_path_pallas.1} parent=5 // pred_region
        %s221 = ssub.s32 %s15, 2
        // Predicated region
        $region45: #{_drop_path_pallas.1} parent=43 // pred_check
          %p222 = pneg %p107
        $region46: #{_drop_path_pallas.1} parent=43 // pred_check_branch
          %224 = sbr.rel (%p222) target = $region48
        $region47: #{_drop_path_pallas.1} parent=43 // pred_region
          %s225 = sand.u32 %s92, 1
          %s226 = scalar_lea.sflag [#allocation4], %s225
          %s227 = sand.u32 %s92, 1
          %s228 = smul.addr %s227, 8
          %s229 = scalar_lea.vmem [#allocation7], %s228
          %230 = dma.done %s226, 128
        $region48: #{_drop_path_pallas.1} parent=43 // pred_fallthru
          _
      $region44: #{_drop_path_pallas.1} parent=5 // pred_fallthru
        _
    $region6: #{_drop_path_pallas.1} parent=1 // loop_footer
      %s19 = sadd.s32 1, %s15
    $region7: #{_drop_path_pallas.1} parent=1 // loop_footer_branch
      %14 = sbr.rel target = $region3
    $region8: #{_drop_path_pallas.1} parent=1 // loop_exit
      _
    %231 = vsyncpa [#allocation3], 1
    %s232 = scalar_lea.sflag [#allocation3], 1
    %233 = vsyncpa %s232, 1
    %234 = vsyncpa [#allocation4], 1
    %s235 = scalar_lea.sflag [#allocation4], 1
    %236 = vsyncpa %s235, 1
    %237 = vsyncpa [#allocation5], 1
    %s238 = scalar_lea.sflag [#allocation5], 1
    %239 = vsyncpa %s238, 1

</llo_original>
